<compile_context>
chip_gen: v7x
topology: tpu7x:2x2x1
jax: 0.10.0
libtpu: 0.0.40
codegen_flags: <defaults>
</compile_context>

<pallas_src>
import functools

import jax
import jax.numpy as jnp
from jax.experimental import pallas as pl
from jax.experimental.pallas import tpu as pltpu


def _compute_padding(filters, dilations):
    """Exactly mirrors PadSame.compute_padding()."""
    paddings = []
    for dim in range(2):
        if dilations is not None:
            filter_size = (filters[dim] - 1) * dilations[dim] + 1
        else:
            filter_size = filters[dim]
        total_padding = filter_size - 1
        additional_padding = int(total_padding % 2 != 0)
        paddings.append((total_padding, additional_padding))
    return paddings


def _pad_same_kernel(x_ref, o_ref, *, f_top, f_bot, t_left, t_right):
    """Zero-pad one (BC, H, W) slab into (BC, H_out, W_out).

    All offsets are compile-time Python ints, so every store below is a
    static-slice store; each output element is written exactly once.
    """
    bc, H, W = x_ref.shape
    _, H_out, W_out = o_ref.shape
    dt = o_ref.dtype

    if f_top > 0:      # top padded rows (full width)
        o_ref[:, 0:f_top, :] = jnp.zeros((bc, f_top, W_out), dt)
    if f_bot > 0:      # bottom padded rows (full width)
        o_ref[:, f_top + H:H_out, :] = jnp.zeros((bc, f_bot, W_out), dt)
    if t_left > 0:     # left padded columns (interior rows only)
        o_ref[:, f_top:f_top + H, 0:t_left] = jnp.zeros((bc, H, t_left), dt)
    if t_right > 0:    # right padded columns (interior rows only)
        o_ref[:, f_top:f_top + H, t_left + W:W_out] = jnp.zeros((bc, H, t_right), dt)
    # Interior: single copy of the input at its static padded offset.
    o_ref[:, f_top:f_top + H, t_left:t_left + W] = x_ref[...]


def _largest_divisor_leq(n, cap):
    cap = max(1, min(n, cap))
    for d in range(cap, 0, -1):
        if n % d == 0:
            return d
    return 1


class PadSame:
    """JAX/Pallas port of the PyTorch PadSame module."""

    def __init__(self, filters, strides, dilations=None):
        self.filters = filters
        self.strides = strides          # unused by forward, kept for parity
        self.dilations = dilations

    def compute_padding(self):
        return _compute_padding(self.filters, self.dilations)

    def __call__(self, x):
        (f_total, f_add), (t_total, t_add) = self.compute_padding()
        f_top = f_total // 2
        f_bot = f_total // 2 + f_add
        t_left = t_total // 2
        t_right = t_total // 2 + t_add

        N, C, H, W = x.shape
        H_out = H + f_top + f_bot
        W_out = W + t_left + t_right

        # Fuse N*C into one axis and block it in large BC chunks so each grid
        # step moves a sizeable tile (amortizes the ~0.35 us per-step cost).
        NC = N * C
        itemsize = jnp.dtype(x.dtype).itemsize
        # Double-buffered input + output footprint per fused-axis element.
        per_bc_bytes = 2 * (H * W + H_out * W_out) * itemsize
        budget = 8 * 1024 * 1024            # safe across v5e / v6e / v7x VMEM
        bc_cap = max(1, budget // max(per_bc_bytes, 1))
        if NC >= 2:
            # Keep at least 2 grid steps so v7x's two TensorCores split the work.
            bc_cap = min(bc_cap, max(1, NC // 2))
        BC = _largest_divisor_leq(NC, bc_cap)

        x_fused = x.reshape(NC, H, W)
        out_bytes = NC * H_out * W_out * itemsize
        footprint = BC * per_bc_bytes
        vmem_limit = int(min(32 * 1024 * 1024,
                             max(4 * 1024 * 1024, 4 * footprint)))

        kernel = functools.partial(
            _pad_same_kernel,
            f_top=f_top, f_bot=f_bot, t_left=t_left, t_right=t_right)

        out = pl.pallas_call(
            kernel,
            out_shape=jax.ShapeDtypeStruct((NC, H_out, W_out), x.dtype),
            grid=(NC // BC,),
            in_specs=[pl.BlockSpec((BC, H, W), lambda i: (i, 0, 0))],
            out_specs=pl.BlockSpec((BC, H_out, W_out), lambda i: (i, 0, 0)),
            compiler_params=pltpu.CompilerParams(
                dimension_semantics=("parallel",),
                vmem_limit_bytes=vmem_limit),
            cost_estimate=pl.CostEstimate(
                flops=0,
                transcendentals=0,
                bytes_accessed=int(x.size * itemsize + out_bytes)),
        )(x_fused)
        return out.reshape(N, C, H_out, W_out)


if __name__ == "__main__":
    key = jax.random.PRNGKey(0)
    # Small NCHW input consistent with a conv front-end: batch=2, channels=4, 16x16.
    x = jax.random.normal(key, (2, 4, 16, 16), dtype=jnp.float32)

    # 3x3 filter, stride 1, dilation 2 -> effective filter 5 -> pad 2 each side.
    mod = PadSame(filters=(3, 3), strides=(1, 1), dilations=(2, 2))
    y = jax.block_until_ready(mod(x))

    (f_total, f_add), (t_total, t_add) = mod.compute_padding()
    f_half, t_half = f_total // 2, t_total // 2
    y_ref = jnp.pad(x, ((0, 0), (0, 0),
                        (f_half, f_half + f_add),
                        (t_half, t_half + t_add)))
    assert y.shape == y_ref.shape, (y.shape, y_ref.shape)
    assert jnp.allclose(y, y_ref), "mismatch vs reference padding"

    # Odd-total-padding path (even filters -> additional pad; f_top becomes 0).
    mod2 = PadSame(filters=(2, 4), strides=(1, 1), dilations=None)
    y2 = jax.block_until_ready(mod2(x))
    (f_t2, f_a2), (t_t2, t_a2) = mod2.compute_padding()
    y2_ref = jnp.pad(x, ((0, 0), (0, 0),
                         (f_t2 // 2, f_t2 // 2 + f_a2),
                         (t_t2 // 2, t_t2 // 2 + t_a2)))
    assert y2.shape == y2_ref.shape
    assert jnp.allclose(y2, y2_ref)

    # No-padding path (1x1 filter): kernel degenerates to a pure copy.
    mod3 = PadSame(filters=(1, 1), strides=(1, 1), dilations=None)
    y3 = jax.block_until_ready(mod3(x))
    assert y3.shape == x.shape
    assert jnp.allclose(y3, x)

    print("KERNEL_OK")
</pallas_src>

<mosaic_0001>
module attributes {stable_mosaic.version = 11 : i64} {
  func.func @_pad_same_kernel(%arg0: i32, %arg1: memref<4x16x16xf32, #tpu.memory_space<vmem>>, %arg2: memref<4x20x20xf32, #tpu.memory_space<vmem>>) attributes {dimension_semantics = [#tpu.dimension_semantics<parallel>], iteration_bounds = array<i64: 2>, scalar_prefetch = 0 : i64, scratch_operands = 0 : i64, tpu.core_type = #tpu.core_type<tc>, window_params = [{transform_indices = @transform_0, window_bounds = array<i64: 4, 16, 16>}, {transform_indices = @transform_1, window_bounds = array<i64: 4, 20, 20>}]} {
    %cst = arith.constant 0.000000e+00 : f32
    %0 = vector.broadcast %cst : f32 to vector<4x2x20xf32>
    %c0 = arith.constant 0 : index
    %c0_0 = arith.constant 0 : index
    %c0_1 = arith.constant 0 : index
    %1 = vector.load %arg2[%c0, %c0_0, %c0_1] : memref<4x20x20xf32, #tpu.memory_space<vmem>>, vector<4x2x20xf32>
    tpu.vector_store %arg2[%c0, %c0_0, %c0_1], %0 {strides = array<i32>} : memref<4x20x20xf32, #tpu.memory_space<vmem>>, vector<4x2x20xf32>,
    %cst_2 = arith.constant 0.000000e+00 : f32
    %2 = vector.broadcast %cst_2 : f32 to vector<4x2x20xf32>
    %c0_3 = arith.constant 0 : index
    %c18 = arith.constant 18 : index
    %c0_4 = arith.constant 0 : index
    %3 = vector.load %arg2[%c0_3, %c18, %c0_4] : memref<4x20x20xf32, #tpu.memory_space<vmem>>, vector<4x2x20xf32>
    tpu.vector_store %arg2[%c0_3, %c18, %c0_4], %2 {strides = array<i32>} : memref<4x20x20xf32, #tpu.memory_space<vmem>>, vector<4x2x20xf32>,
    %cst_5 = arith.constant 0.000000e+00 : f32
    %4 = vector.broadcast %cst_5 : f32 to vector<4x16x2xf32>
    %c0_6 = arith.constant 0 : index
    %c2 = arith.constant 2 : index
    %c0_7 = arith.constant 0 : index
    %5 = vector.load %arg2[%c0_6, %c2, %c0_7] : memref<4x20x20xf32, #tpu.memory_space<vmem>>, vector<4x16x2xf32>
    tpu.vector_store %arg2[%c0_6, %c2, %c0_7], %4 {strides = array<i32>} : memref<4x20x20xf32, #tpu.memory_space<vmem>>, vector<4x16x2xf32>,
    %cst_8 = arith.constant 0.000000e+00 : f32
    %6 = vector.broadcast %cst_8 : f32 to vector<4x16x2xf32>
    %c0_9 = arith.constant 0 : index
    %c2_10 = arith.constant 2 : index
    %c18_11 = arith.constant 18 : index
    %7 = vector.load %arg2[%c0_9, %c2_10, %c18_11] : memref<4x20x20xf32, #tpu.memory_space<vmem>>, vector<4x16x2xf32>
    tpu.vector_store %arg2[%c0_9, %c2_10, %c18_11], %6 {strides = array<i32>} : memref<4x20x20xf32, #tpu.memory_space<vmem>>, vector<4x16x2xf32>,
    %c0_12 = arith.constant 0 : index
    %c0_13 = arith.constant 0 : index
    %c0_14 = arith.constant 0 : index
    %8 = vector.load %arg1[%c0_12, %c0_13, %c0_14] : memref<4x16x16xf32, #tpu.memory_space<vmem>>, vector<4x16x16xf32>
    %c0_15 = arith.constant 0 : index
    %c2_16 = arith.constant 2 : index
    %c2_17 = arith.constant 2 : index
    %9 = vector.load %arg2[%c0_15, %c2_16, %c2_17] : memref<4x20x20xf32, #tpu.memory_space<vmem>>, vector<4x16x16xf32>
    tpu.vector_store %arg2[%c0_15, %c2_16, %c2_17], %8 {strides = array<i32>} : memref<4x20x20xf32, #tpu.memory_space<vmem>>, vector<4x16x16xf32>,
    return
  }
  func.func @transform_0(%arg0: i32) -> (i32, i32, i32) {
    %c0_i32 = arith.constant 0 : i32
    %c0_i32_0 = arith.constant 0 : i32
    %c0_i32_1 = arith.constant 0 : i32
    return %arg0, %c0_i32, %c0_i32_0 : i32, i32, i32
  }
  func.func @transform_1(%arg0: i32) -> (i32, i32, i32) {
    %c0_i32 = arith.constant 0 : i32
    %c0_i32_0 = arith.constant 0 : i32
    %c0_i32_1 = arith.constant 0 : i32
    return %arg0, %c0_i32, %c0_i32_0 : i32, i32, i32
  }
}

</mosaic_0001>

<llo_original>
// kernel: tpu_custom_call.1
$region0: #{tpu_custom_call.1}
  #allocation0 [shape = 'u32[]', space=smem, size = 0x4, offset = 0x4, fixed_abs, tag = 'smem constant byte address 0x4 - core index']
  #allocation1 [shape = 'u32[144,128]{1,0:T(1,128)}', space=vmem, size = 0x12000, scoped, tag = 'internal scratch']
  %s0 = inlined_call_operand.hbm [shape: f32[8,16,16], index: 0, kind: input, shape index: {}]
  %s1 = inlined_call_operand.vmem [shape: f32[8,20,20], index: 1, kind: output, shape index: {}]
  %s2 = sld [smem:[#allocation0]]
  $region41: #{tpu_custom_call.1} parent=0
    _
  %s4 = ssub.s32 1, %s2
  %s5 = scalar_select 0, %s4, %s2
  $region1: #{tpu_custom_call.1} parent=0
    #allocation2 [shape = 'u8[65536]{0}', space=vmem, size = 0x10000, scoped, tag = 'input window, operand 0']
    #allocation3 [shape = 's32[2]{0}', space=sflag, size = 0x8, scoped, tag = 'scoped memory for tpu_custom_call.1']
    %6 = vsyncpa [#allocation3], 0
    %s7 = scalar_lea.sflag [#allocation3], 1
    %8 = vsyncpa %s7, 0
    loop: start=0, step=1, limit=4
    $region2: #{tpu_custom_call.1} parent=1 // loop_pre_header
      _
    $region3: #{tpu_custom_call.1} parent=1 // loop_header
      %s10 = sphi 0, %s14
      %p11 = scmp.ge.s32.totalorder %s10, 4
      %s20 = sphi 0, %s22
      %s23 = sphi 0, %s20
      %s24 = sphi 0, %s23
      %s40 = sphi 0, %s24
      %s46 = sphi 0, %s48
      %s49 = sphi 0, %s46
      %s50 = sphi 0, %s49
      %s66 = sphi 0, %s50
    $region4: #{tpu_custom_call.1} parent=1 // loop_header_branch
      %13 = sbr.rel (%p11) target = $region8
    $region5: #{tpu_custom_call.1} parent=1 // loop_body
      %s15 = ssub.s32 %s10, 1
      %s16 = ssub.s32 %s10, 2
      %s17 = sadd.s32 %s10, 1
      %s18 = ssub.s32 %s10, %s17
      %p19 = scmp.eq.s32.totalorder %s18, 0
      %s21 = sadd.s32 %s20, 1
      %s22 = scalar_select %p19, %s20, %s21
      %p25 = pneg %p19
      %p26 = scmp.eq.s32.totalorder %s10, 1
      %p27 = por %p25, %p26
      %p28 = scmp.ne.s32.totalorder %s20, %s23
      %p29 = scmp.eq.s32.totalorder %s10, 0
      %p30 = por %p28, %p29
      %p31 = scmp.ne.s32.totalorder %s20, %s23
      %p32 = scmp.eq.s32.totalorder %s15, 1
      %p33 = por %p31, %p32
      %p34 = scmp.ne.s32.totalorder %s23, %s24
      %p35 = scmp.eq.s32.totalorder %s15, 0
      %p36 = por %p34, %p35
      %p37 = scmp.ne.s32.totalorder %s23, %s24
      %p38 = scmp.eq.s32.totalorder %s16, 1
      %p39 = por %p37, %p38
      %p41 = scmp.ne.s32.totalorder %s24, %s40
      %p42 = scmp.eq.s32.totalorder %s16, 0
      %p43 = por %p41, %p42
      %s44 = ssub.s32 %s10, %s17
      %p45 = scmp.eq.s32.totalorder %s44, 0
      %s47 = sadd.s32 %s46, 1
      %s48 = scalar_select %p45, %s46, %s47
      %p51 = pneg %p45
      %p52 = scmp.eq.s32.totalorder %s10, 1
      %p53 = por %p51, %p52
      %p54 = scmp.ne.s32.totalorder %s46, %s49
      %p55 = scmp.eq.s32.totalorder %s10, 0
      %p56 = por %p54, %p55
      %p57 = scmp.ne.s32.totalorder %s46, %s49
      %p58 = scmp.eq.s32.totalorder %s15, 1
      %p59 = por %p57, %p58
      %p60 = scmp.ne.s32.totalorder %s49, %s50
      %p61 = scmp.eq.s32.totalorder %s15, 0
      %p62 = por %p60, %p61
      %p63 = scmp.ne.s32.totalorder %s49, %s50
      %p64 = scmp.eq.s32.totalorder %s16, 1
      %p65 = por %p63, %p64
      %p67 = scmp.ne.s32.totalorder %s50, %s66
      %p68 = scmp.eq.s32.totalorder %s16, 0
      %p69 = por %p67, %p68
      %p70 = scmp.le.s32.totalorder 1, %s10
      %p71 = scmp.lt.s32.totalorder %s10, 3
      %p72 = pnand %p70, %p71
      %p73 = pneg %p72
      // Predicated region
      $region9: #{tpu_custom_call.1} parent=5 // pred_check
        _
      $region10: #{tpu_custom_call.1} parent=5 // pred_check_branch
        %75 = sbr.rel (%p72) target = $region12
      $region11: #{tpu_custom_call.1} parent=5 // pred_region
        %s76 = ssub.s32 %s10, 1
      $region12: #{tpu_custom_call.1} parent=5 // pred_fallthru
        _
      %p77 = scmp.lt.s32.totalorder %s10, 2
      // Predicated region
      $region13: #{tpu_custom_call.1} parent=5 // pred_check
        %p78 = pneg %p77
      $region14: #{tpu_custom_call.1} parent=5 // pred_check_branch
        %80 = sbr.rel (%p78) target = $region16
      $region15: #{tpu_custom_call.1} parent=5 // pred_region
        // Predicated region
        $region17: #{tpu_custom_call.1} parent=15 // pred_check
          %p81 = pneg %p30
        $region18: #{tpu_custom_call.1} parent=15 // pred_check_branch
          %83 = sbr.rel (%p81) target = $region20
        $region19: #{tpu_custom_call.1} parent=15 // pred_region
          %s84 = sand.u32 %s20, 1
          %s85 = scalar_lea.sflag [#allocation3], %s84
          %s86 = sand.u32 %s20, 1
          %s87 = smul.addr %s86, 64
          %s88 = scalar_lea.vmem [#allocation2], %s87
          %s89 = smul.u32 4, %s10
          %s91 = ssub.s32 1024, 1024
          %92 = vsyncadd %s85, %s91
          %s93 = smul.addr %s89, 2
          %s94 = smul.addr %s93, 128
          %s95 = scalar_lea.hbm %s0, %s94
          %s96 = sshll.u32 %s88, 4
          %s97 = int_to_ptr.vmem [resolvable:$true] %s96
          %102 = dma.hbm_to_vmem [thread:$0]  %s95, 1024, %s97, %s85, 128, 128, 8
        $region20: #{tpu_custom_call.1} parent=15 // pred_fallthru
          _
      $region16: #{tpu_custom_call.1} parent=5 // pred_fallthru
        _
      %p103 = scmp.le.s32.totalorder 1, %s10
      %p104 = scmp.lt.s32.totalorder %s10, 3
      %p105 = pnand %p103, %p104
      %p106 = pneg %p105
      // Predicated region
      $region21: #{tpu_custom_call.1} parent=5 // pred_check
        _
      $region22: #{tpu_custom_call.1} parent=5 // pred_check_branch
        %108 = sbr.rel (%p105) target = $region24
      $region23: #{tpu_custom_call.1} parent=5 // pred_region
        %s109 = ssub.s32 %s10, 1
        %s110 = sand.u32 %s23, 1
        %s111 = scalar_lea.sflag [#allocation3], %s110
        %s112 = sand.u32 %s23, 1
        %s113 = smul.addr %s112, 64
        %s114 = scalar_lea.vmem [#allocation2], %s113
        // Predicated region
        $region25: #{tpu_custom_call.1} parent=23 // pred_check
          %p115 = pneg %p36
        $region26: #{tpu_custom_call.1} parent=23 // pred_check_branch
          %117 = sbr.rel (%p115) target = $region28
        $region27: #{tpu_custom_call.1} parent=23 // pred_region
          %118 = dma.done %s111, 1024
        $region28: #{tpu_custom_call.1} parent=23 // pred_fallthru
          _
        %s119 = sand.u32 %s23, 1
        %s120 = scalar_lea.sflag [#allocation3], %s119
        %s121 = sand.u32 %s23, 1
        %s122 = smul.addr %s121, 64
        %s123 = scalar_lea.vmem [#allocation2], %s122
        %p124 = pneg %p36
        %p125 = pneg %p33
        %p126 = pneg %p62
        %p127 = pneg %p59
        %s128 = smul.u32 4, %s15
        %p129 = scmp.lt.s32.totalorder %s128, 7
        %s130 = scalar_select %p129, %s128, 7
        %s131 = smul.addr %s130, 3
        %s132 = smul.addr %s131, 8
        %s133 = scalar_lea.vmem %s1, %s132
        %s134 = smul.u32 4, %s15
        %s135 = smul.u32 4, %s15
        %p136 = scmp.lt.s32.totalorder %s135, 7
        %s137 = scalar_select %p136, %s135, 7
        %s138 = smul.addr %s137, 3
        %s139 = smul.addr %s138, 8
        %s140 = scalar_lea.vmem %s1, %s139
        %s141 = smul.u32 4, %s15
        %vm142 = vcmask 156672
        %143 = vst.msk [vmem:[%s140] sm:$0x3] %vm142, 0.0
        %144 = vst.msk [vmem:[%s140 + $0x18] sm:$0x3] %vm142, 0.0
        %145 = vst.msk [vmem:[%s140 + $0x30] sm:$0x3] %vm142, 0.0
        %146 = vst.msk [vmem:[%s140 + $0x48] sm:$0x3] %vm142, 0.0
        %147 = vst.msk [vmem:[%s140 + $0x12] sm:$0x3] %vm142, 0.0
        %148 = vst.msk [vmem:[%s140 + $0x2a] sm:$0x3] %vm142, 0.0
        %149 = vst.msk [vmem:[%s140 + $0x42] sm:$0x3] %vm142, 0.0
        %150 = vst.msk [vmem:[%s140 + $0x5a] sm:$0x3] %vm142, 0.0
        %vm151 = vcmask 15360
        %152 = vst.msk [vmem:[%s140 + $0x2] sm:$0xff] %vm151, 0.0
        %153 = vst.msk [vmem:[%s140 + $0xa] sm:$0xff] %vm151, 0.0
        %154 = vst.msk [vmem:[%s140 + $0x1a] sm:$0xff] %vm151, 0.0
        %155 = vst.msk [vmem:[%s140 + $0x22] sm:$0xff] %vm151, 0.0
        %156 = vst.msk [vmem:[%s140 + $0x32] sm:$0xff] %vm151, 0.0
        %157 = vst.msk [vmem:[%s140 + $0x3a] sm:$0xff] %vm151, 0.0
        %158 = vst.msk [vmem:[%s140 + $0x4a] sm:$0xff] %vm151, 0.0
        %159 = vst.msk [vmem:[%s140 + $0x52] sm:$0xff] %vm151, 0.0
        %vm160 = vcmask 162960
        %161 = vst.msk [vmem:[%s140 + $0x2] sm:$0xff] %vm160, 0.0
        %162 = vst.msk [vmem:[%s140 + $0xa] sm:$0xff] %vm160, 0.0
        %163 = vst.msk [vmem:[%s140 + $0x1a] sm:$0xff] %vm160, 0.0
        %164 = vst.msk [vmem:[%s140 + $0x22] sm:$0xff] %vm160, 0.0
        %165 = vst.msk [vmem:[%s140 + $0x32] sm:$0xff] %vm160, 0.0
        %166 = vst.msk [vmem:[%s140 + $0x3a] sm:$0xff] %vm160, 0.0
        %167 = vst.msk [vmem:[%s140 + $0x4a] sm:$0xff] %vm160, 0.0
        %168 = vst.msk [vmem:[%s140 + $0x52] sm:$0xff] %vm160, 0.0
        %v169 = vld [vmem:[%s114] sm:$0xff]
        %v170 = vld [vmem:[%s114 + $0x8] sm:$0xff]
        %v171 = vld [vmem:[%s114 + $0x10] sm:$0xff]
        %v172 = vld [vmem:[%s114 + $0x18] sm:$0xff]
        %v173 = vld [vmem:[%s114 + $0x20] sm:$0xff]
        %v174 = vld [vmem:[%s114 + $0x28] sm:$0xff]
        %v175 = vld [vmem:[%s114 + $0x30] sm:$0xff]
        %v176 = vld [vmem:[%s114 + $0x38] sm:$0xff]
        %185 = vrot.lane.b32.xlu0 %v169, 2
        %v186 = vpop.permute.xlu0 %185
        %187 = vrot.lane.b32.xlu0 %v170, 2
        %v188 = vpop.permute.xlu0 %187
        %189 = vrot.lane.b32.xlu0 %v171, 2
        %v190 = vpop.permute.xlu0 %189
        %191 = vrot.lane.b32.xlu0 %v172, 2
        %v192 = vpop.permute.xlu0 %191
        %193 = vrot.lane.b32.xlu0 %v173, 2
        %v194 = vpop.permute.xlu0 %193
        %195 = vrot.lane.b32.xlu0 %v174, 2
        %v196 = vpop.permute.xlu0 %195
        %197 = vrot.lane.b32.xlu0 %v175, 2
        %v198 = vpop.permute.xlu0 %197
        %199 = vrot.lane.b32.xlu0 %v176, 2
        %v200 = vpop.permute.xlu0 %199
        %vm209 = vcmask 146448
        %210 = vst.msk [vmem:[%s140 + $0x2] sm:$0xff] %vm209, %v186
        %211 = vst.msk [vmem:[%s140 + $0xa] sm:$0xff] %vm209, %v188
        %212 = vst.msk [vmem:[%s140 + $0x1a] sm:$0xff] %vm209, %v190
        %213 = vst.msk [vmem:[%s140 + $0x22] sm:$0xff] %vm209, %v192
        %214 = vst.msk [vmem:[%s140 + $0x32] sm:$0xff] %vm209, %v194
        %215 = vst.msk [vmem:[%s140 + $0x3a] sm:$0xff] %vm209, %v196
        %216 = vst.msk [vmem:[%s140 + $0x4a] sm:$0xff] %vm209, %v198
        %217 = vst.msk [vmem:[%s140 + $0x52] sm:$0xff] %vm209, %v200
        %s218 = smul.u32 4, %s15
        %p219 = scmp.lt.s32.totalorder %s218, 7
        %s220 = scalar_select %p219, %s218, 7
        %s221 = smul.addr %s220, 3
        %s222 = smul.addr %s221, 8
        %s223 = scalar_lea.vmem %s1, %s222
        // Predicated region
        $region29: #{tpu_custom_call.1} parent=23 // pred_check
          %p224 = pneg %p59
        $region30: #{tpu_custom_call.1} parent=23 // pred_check_branch
          %226 = sbr.rel (%p224) target = $region32
        $region31: #{tpu_custom_call.1} parent=23 // pred_region
          %s227 = smul.u32 4, %s15
        $region32: #{tpu_custom_call.1} parent=23 // pred_fallthru
          _
      $region24: #{tpu_custom_call.1} parent=5 // pred_fallthru
        _
      %p228 = scmp.le.s32.totalorder 2, %s10
      // Predicated region
      $region33: #{tpu_custom_call.1} parent=5 // pred_check
        %p229 = pneg %p228
      $region34: #{tpu_custom_call.1} parent=5 // pred_check_branch
        %231 = sbr.rel (%p229) target = $region36
      $region35: #{tpu_custom_call.1} parent=5 // pred_region
        %s232 = ssub.s32 %s10, 2
        // Predicated region
        $region37: #{tpu_custom_call.1} parent=35 // pred_check
          %p233 = pneg %p65
        $region38: #{tpu_custom_call.1} parent=35 // pred_check_branch
          %235 = sbr.rel (%p233) target = $region40
        $region39: #{tpu_custom_call.1} parent=35 // pred_region
          %s236 = smul.u32 4, %s16
          %p237 = scmp.lt.s32.totalorder %s236, 7
          %s238 = scalar_select %p237, %s236, 7
          %s239 = smul.addr %s238, 3
          %s240 = smul.addr %s239, 8
          %s241 = scalar_lea.vmem %s1, %s240
        $region40: #{tpu_custom_call.1} parent=35 // pred_fallthru
          _
      $region36: #{tpu_custom_call.1} parent=5 // pred_fallthru
        _
    $region6: #{tpu_custom_call.1} parent=1 // loop_footer
      %s14 = sadd.s32 1, %s10
    $region7: #{tpu_custom_call.1} parent=1 // loop_footer_branch
      %9 = sbr.rel target = $region3
    $region8: #{tpu_custom_call.1} parent=1 // loop_exit
      _
    %242 = vsyncpa [#allocation3], 1
    %s243 = scalar_lea.sflag [#allocation3], 1
    %244 = vsyncpa %s243, 1

</llo_original>
